<compile_context>
chip_gen: v5e
topology: v5e:2x2
jax: 0.10.0
libtpu: 0.0.40
codegen_flags: <defaults>
</compile_context>

<pallas_src>
import jax
import jax.numpy as jnp
from jax.experimental import pallas as pl
from jax.experimental.pallas import tpu as pltpu

# ----- small synthetic config (consistent with the module) -----
B = 2                      # batch
T = 8                      # block_size / seq len
E = 32                     # embeddings_dims
H = 4                      # no_of_heads
HS = E // H                # head_size
L = 16                     # latent_dim
EXPERTS = 4
TOP_K = 2                  # in-kernel gating below is specialized to top-2
HID = 2 * E                # SwiGLU hidden dims
NE1 = EXPERTS + 1          # routed experts + shared expert
BT = B * T

# fused W1|pad|W2|pad|gate layout (lane-tile aligned slice starts)
W1_OFF = 0
W2_OFF = 384
G_OFF = 768
GFF_W = G_OFF + EXPERTS    # 772
PADW = W2_OFF - NE1 * HID  # 64 zero lanes after each 320-lane half

EPS = float(jnp.finfo(jnp.float32).eps)   # torch RMSNorm default eps (None -> finfo eps)
NEG = -1e20


def _rmsnorm(x, w):
    # x: (T, E), w: (1, E); keep in f32
    ms = jnp.mean(x * x, axis=-1, keepdims=True)
    return x * jax.lax.rsqrt(ms + EPS) * w


# ---------------------------------------------------------------------------
# Fused kernel (one grid step = one batch element):
#   RMSNorm1 -> MHLA (Wv/Wo absorbed) -> residual -> RMSNorm2 ->
#   top-2 gating -> MoE (4 routed + 1 shared SwiGLU experts) -> residual.
# ---------------------------------------------------------------------------
def decoder_kernel(x_ref, rms1_ref, rms2_ref, wlatq_ref, m_ref, wgff_ref,
                   w3_ref, out_ref):
    x = x_ref[...]                                     # (T, E) f32
    xn1 = _rmsnorm(x, rms1_ref[...])
    xn1b = xn1.astype(jnp.bfloat16)

    # --- fused latent + absorbed-query projection (one 128-lane matmul) ---
    latq = jnp.dot(xn1b, wlatq_ref[...], preferred_element_type=jnp.float32)  # (T, 2*H*L)
    lat = latq[:, :H * L]                              # (T, H*L) -> kv_cache
    q_all = latq[:, H * L:]                            # (T, H*L)

    # The torch rectangular mask tril(ones(T, (h+1)*T)) zeroes every latent
    # block but the first (exp(-1e20) == 0), so every head only attends to
    # head-0's latent matrix.
    lat0 = lat[:, :L].astype(jnp.bfloat16)             # (T, L)

    # Per-batch causal mask (B is on the grid -> no cross-batch blocks).
    row = jax.lax.broadcasted_iota(jnp.int32, (T, T), 0)
    col = jax.lax.broadcasted_iota(jnp.int32, (T, T), 1)
    causal = col <= row

    scale = HS ** -0.5
    zs = []
    for h in range(H):
        qh = q_all[:, h * L:(h + 1) * L].astype(jnp.bfloat16)
        s = jax.lax.dot_general(qh, lat0, (((1,), (1,)), ((), ())),
                                preferred_element_type=jnp.float32) * scale   # (T, T)
        s = jnp.where(causal, s, NEG)                  # mask in f32
        mx = jnp.max(s, axis=-1, keepdims=True)
        e = jnp.exp(s - mx)
        p = e * pl.reciprocal(jnp.sum(e, axis=-1, keepdims=True), approx=True)
        # W_v is absorbed into m_ref; PV is just p @ lat0 (no full-width PV).
        zs.append(jnp.dot(p.astype(jnp.bfloat16), lat0,
                          preferred_element_type=jnp.float32))                # (T, L)
    z = jnp.concatenate(zs, axis=-1)                   # (T, H*L)
    # single (T, H*L) @ (H*L, E) matmul replaces Wv per head + (E, E) out-proj
    attn = jnp.dot(z.astype(jnp.bfloat16), m_ref[...],
                   preferred_element_type=jnp.float32)                        # (T, E)

    x1 = x + attn
    xn2 = _rmsnorm(x1, rms2_ref[...])
    xn2b = xn2.astype(jnp.bfloat16)

    # --- fused W1 | W2 | gate projection over the shared LHS ---
    big = jnp.dot(xn2b, wgff_ref[...], preferred_element_type=jnp.float32)    # (T, 772)
    h1 = big[:, W1_OFF:W1_OFF + NE1 * HID]             # (T, 320)
    h2 = big[:, W2_OFF:W2_OFF + NE1 * HID]             # (T, 320)
    gl = big[:, G_OFF:G_OFF + EXPERTS]                 # (T, EXPERTS)

    # --- in-kernel top-2-of-4 gating (torch.topk + scatter(-1e20) + softmax) ---
    # TODO(synk): assumes distinct gate logits per row; exact ties (measure
    # zero for continuous data) could keep >2 experts unlike torch.topk.
    m1 = jnp.max(gl, axis=-1, keepdims=True)
    m2 = jnp.max(jnp.where(gl >= m1, NEG, gl), axis=-1, keepdims=True)        # 2nd largest
    gmask = jnp.where(gl >= m2, gl, NEG)
    ge = jnp.exp(gmask - m1)
    probs = ge * pl.reciprocal(jnp.sum(ge, axis=-1, keepdims=True), approx=True)

    # --- MoE: 4 routed + 1 shared SwiGLU expert, lane-stacked weights ---
    g = h1 * pl.reciprocal(1.0 + jnp.exp(-h1), approx=True) * h2              # swish(h1)*h2
    # routed expert hidden blocks scaled by their routing prob, shared = 1;
    # non-chosen experts have prob exactly 0, matching the torch scatter path.
    wblk = jnp.concatenate(
        [jnp.broadcast_to(probs[:, i:i + 1], (T, HID)) for i in range(EXPERTS)]
        + [jnp.ones((T, HID), jnp.float32)], axis=-1)                         # (T, 5*HID)
    gw = (g * wblk).astype(jnp.bfloat16)
    moe = jnp.dot(gw, w3_ref[...], preferred_element_type=jnp.float32)        # (T, E)

    # single combined store: [ y | kv_lane ]
    out_ref[...] = jnp.concatenate([x1 + moe, lat], axis=-1)                  # (T, E + H*L)


# ---------------------------------------------------------------------------
# Wrapper
# ---------------------------------------------------------------------------
def pack_params(p):
    """Input-independent weight preprocessing: stack heads/experts along the
    lane axis, fuse projections that share an LHS, absorb Wv into Wo, and
    cast matmul weights to bf16 (halves weight DMA bytes)."""
    bf = jnp.bfloat16
    # [ W_dkv (heads stacked) | absorbed_q (heads stacked) ]  -> (E, 128)
    w_latq = jnp.concatenate(
        [jnp.transpose(p["wdkv"], (1, 0, 2)).reshape(E, H * L),
         jnp.transpose(p["aq"], (1, 0, 2)).reshape(E, H * L)], axis=1).astype(bf)
    # absorbed Wv -> Wo:  M = stack_h( Wv_h @ Wo[h*HS:(h+1)*HS, :] )  (H*L, E)
    m = jnp.einsum("hls,hse->hle", p["wv"],
                   p["wo"].reshape(H, HS, E)).reshape(H * L, E).astype(bf)
    # [ W1 stacked | pad | W2 stacked | pad | gate ]  -> (E, 772)
    w1p = jnp.transpose(p["w1"], (1, 0, 2)).reshape(E, NE1 * HID)
    w2p = jnp.transpose(p["w2"], (1, 0, 2)).reshape(E, NE1 * HID)
    pad = jnp.zeros((E, PADW), jnp.float32)
    w_gff = jnp.concatenate([w1p, pad, w2p, pad, p["wg"]], axis=1).astype(bf)
    return dict(rms1=p["rms1"], rms2=p["rms2"], w_latq=w_latq, m=m,
                w_gff=w_gff, w3=p["w3"].reshape(NE1 * HID, E).astype(bf))


def decoder_layer(x, kp):
    xf = x.reshape(BT, E)                 # fold batch into rows; grid picks T-row blocks

    def w_spec(shape):
        return pl.BlockSpec(shape, lambda b: (0,) * len(shape))   # resident weights

    slab = pl.pallas_call(
        decoder_kernel,
        out_shape=jax.ShapeDtypeStruct((BT, E + H * L), jnp.float32),
        grid=(B,),
        in_specs=[
            pl.BlockSpec((T, E), lambda b: (b, 0)),   # this batch element's rows
            w_spec((1, E)),                           # rms1 weight
            w_spec((1, E)),                           # rms2 weight
            w_spec((E, 2 * H * L)),                   # fused W_dkv | absorbed_q
            w_spec((H * L, E)),                       # absorbed Wv @ Wo
            w_spec((E, GFF_W)),                       # fused W1 | W2 | gate
            w_spec((NE1 * HID, E)),                   # expert W3 stacked
        ],
        out_specs=pl.BlockSpec((T, E + H * L), lambda b: (b, 0)),
        compiler_params=pltpu.CompilerParams(dimension_semantics=("parallel",)),
    )(xf, kp["rms1"], kp["rms2"], kp["w_latq"], kp["m"], kp["w_gff"], kp["w3"])

    y = slab[:, :E].reshape(B, T, E)
    # free layout plumbing: lane-dense (B*T, H*L) -> torch layout (B, H*T, L)
    kv = jnp.transpose(slab[:, E:].reshape(B, T, H, L), (0, 2, 1, 3)).reshape(B, H * T, L)
    return y, kv


# ---------------------------------------------------------------------------
# Pure-JAX f32 reference (same math as the torch module) for a sanity check.
# ---------------------------------------------------------------------------
def reference(x, p):
    def rms(z, w):
        return z * jax.lax.rsqrt(jnp.mean(z * z, -1, keepdims=True) + EPS) * w

    xn1 = rms(x, p["rms1"])
    lats = [xn1 @ p["wdkv"][h] for h in range(H)]
    kv = jnp.concatenate(lats, axis=1)
    lat0 = lats[0]
    causal = jnp.tril(jnp.ones((T, T))) > 0
    outs = []
    for h in range(H):
        q = xn1 @ p["aq"][h]
        s = jnp.einsum("btl,bsl->bts", q, lat0) * HS ** -0.5
        s = jnp.where(causal[None], s, NEG)
        w = jax.nn.softmax(s, -1)
        outs.append(w @ (lat0 @ p["wv"][h]))
    x1 = x + jnp.concatenate(outs, -1) @ p["wo"]
    xn2 = rms(x1, p["rms2"])
    gl = xn2 @ p["wg"]
    _, ti = jax.lax.top_k(gl, TOP_K)
    chosen = (jnp.arange(EXPERTS)[None, None, None, :] == ti[..., None]).any(-2)
    probs = jax.nn.softmax(jnp.where(chosen, gl, NEG), -1)

    def swiglu(i, z):
        h1 = z @ p["w1"][i]
        h2 = z @ p["w2"][i]
        return (h1 * (1.0 / (1.0 + jnp.exp(-h1))) * h2) @ p["w3"][i]

    moe = sum(probs[..., i:i + 1] * swiglu(i, xn2) for i in range(EXPERTS))
    moe = moe + swiglu(EXPERTS, xn2)
    return x1 + moe, kv


def init_params(key):
    ks = jax.random.split(key, 12)
    s = 0.02
    wdkv = s * jax.random.normal(ks[0], (H, E, L), jnp.float32)          # W_dkv^T per head
    query_w = s * jax.random.normal(ks[1], (H, HS, E), jnp.float32)      # torch query.weight
    wk_w = s * jax.random.normal(ks[2], (H, HS, L), jnp.float32)         # torch W_k.weight
    # absorbed_q = query.weight.T @ W_k.weight (input-independent preprocessing)
    aq = jnp.einsum("hse,hsl->hel", query_w, wk_w)
    wv = s * jax.random.normal(ks[3], (H, L, HS), jnp.float32)           # W_v^T per head
    wo = s * jax.random.normal(ks[4], (E, E), jnp.float32)               # MHLA out proj^T
    wg = s * jax.random.normal(ks[5], (E, EXPERTS), jnp.float32)         # gate^T
    # experts 0..EXPERTS-1 routed, index EXPERTS = shared expert
    w1 = s * jax.random.normal(ks[6], (EXPERTS + 1, E, HID), jnp.float32)
    w2 = s * jax.random.normal(ks[7], (EXPERTS + 1, E, HID), jnp.float32)
    w3 = s * jax.random.normal(ks[8], (EXPERTS + 1, HID, E), jnp.float32)
    rms1 = jnp.ones((1, E), jnp.float32)                                 # RMSNorm default init
    rms2 = jnp.ones((1, E), jnp.float32)
    return dict(rms1=rms1, rms2=rms2, wdkv=wdkv, aq=aq, wv=wv, wo=wo, wg=wg,
                w1=w1, w2=w2, w3=w3)


if __name__ == "__main__":
    key = jax.random.PRNGKey(0)
    kx, kw = jax.random.split(key)
    x = jax.random.normal(kx, (B, T, E), jnp.float32)
    params = init_params(kw)
    kparams = pack_params(params)

    y, kv_cache = jax.jit(decoder_layer)(x, kparams)
    jax.block_until_ready((y, kv_cache))

    y_ref, kv_ref = reference(x, params)
    assert y.shape == (B, T, E) and kv_cache.shape == (B, H * T, L)
    assert jnp.allclose(y, y_ref, atol=1e-2, rtol=1e-2)
    assert jnp.allclose(kv_cache, kv_ref, atol=1e-2, rtol=1e-2)

    print("KERNEL_OK")
</pallas_src>

<mosaic_0001>
module attributes {stable_mosaic.version = 11 : i64} {
  func.func @decoder_kernel(%arg0: i32, %arg1: memref<8x32xf32, #tpu.memory_space<vmem>>, %arg2: memref<1x32xf32, #tpu.memory_space<vmem>>, %arg3: memref<1x32xf32, #tpu.memory_space<vmem>>, %arg4: memref<32x128xbf16, #tpu.memory_space<vmem>>, %arg5: memref<64x32xbf16, #tpu.memory_space<vmem>>, %arg6: memref<32x772xbf16, #tpu.memory_space<vmem>>, %arg7: memref<320x32xbf16, #tpu.memory_space<vmem>>, %arg8: memref<8x96xf32, #tpu.memory_space<vmem>>) attributes {dimension_semantics = [#tpu.dimension_semantics<parallel>], iteration_bounds = array<i64: 2>, scalar_prefetch = 0 : i64, scratch_operands = 0 : i64, tpu.core_type = #tpu.core_type<tc>, window_params = [{transform_indices = @transform_0, window_bounds = array<i64: 8, 32>}, {pipeline_mode = #tpu.pipeline_mode<synchronous>, transform_indices = @transform_1, window_bounds = array<i64: 1, 32>}, {pipeline_mode = #tpu.pipeline_mode<synchronous>, transform_indices = @transform_2, window_bounds = array<i64: 1, 32>}, {pipeline_mode = #tpu.pipeline_mode<synchronous>, transform_indices = @transform_3, window_bounds = array<i64: 32, 128>}, {pipeline_mode = #tpu.pipeline_mode<synchronous>, transform_indices = @transform_4, window_bounds = array<i64: 64, 32>}, {pipeline_mode = #tpu.pipeline_mode<synchronous>, transform_indices = @transform_5, window_bounds = array<i64: 32, 772>}, {pipeline_mode = #tpu.pipeline_mode<synchronous>, transform_indices = @transform_6, window_bounds = array<i64: 320, 32>}, {transform_indices = @transform_7, window_bounds = array<i64: 8, 96>}]} {
    %c0 = arith.constant 0 : index
    %c0_0 = arith.constant 0 : index
    %0 = vector.load %arg1[%c0, %c0_0] : memref<8x32xf32, #tpu.memory_space<vmem>>, vector<8x32xf32>
    %c0_1 = arith.constant 0 : index
    %c0_2 = arith.constant 0 : index
    %1 = vector.load %arg2[%c0_1, %c0_2] : memref<1x32xf32, #tpu.memory_space<vmem>>, vector<1x32xf32>
    %2 = arith.mulf %0, %0 : vector<8x32xf32>
    %cst = arith.constant dense<0.000000e+00> : vector<8xf32>
    %3 = vector.multi_reduction <add>, %2, %cst [1] : vector<8x32xf32> to vector<8xf32>
    %4 = vector.shape_cast %3 : vector<8xf32> to vector<8x1xf32>
    %cst_3 = arith.constant 3.200000e+01 : f32
    %5 = vector.broadcast %cst_3 : f32 to vector<8x1xf32>
    %6 = arith.divf %4, %5 : vector<8x1xf32>
    %cst_4 = arith.constant 1.1920929E-7 : f32
    %7 = vector.broadcast %cst_4 : f32 to vector<8x1xf32>
    %8 = arith.addf %6, %7 : vector<8x1xf32>
    %9 = math.rsqrt %8 : vector<8x1xf32>
    %10 = vector.broadcast %9 : vector<8x1xf32> to vector<8x32xf32>
    %11 = arith.mulf %0, %10 : vector<8x32xf32>
    %12 = vector.broadcast %1 : vector<1x32xf32> to vector<8x32xf32>
    %13 = arith.mulf %11, %12 : vector<8x32xf32>
    %14 = arith.truncf %13 : vector<8x32xf32> to vector<8x32xbf16>
    %c0_5 = arith.constant 0 : index
    %c0_6 = arith.constant 0 : index
    %15 = vector.load %arg4[%c0_5, %c0_6] : memref<32x128xbf16, #tpu.memory_space<vmem>>, vector<32x128xbf16>
    %cst_7 = arith.constant dense<0.000000e+00> : vector<8x128xf32>
    %16 = tpu.matmul %14, %15, %cst_7 {dimension_numbers = #tpu.dot_dimension_numbers<[1], [0], [0], [1], [0, 0, 1, 1], [], []>} : vector<8x32xbf16>, vector<32x128xbf16>, vector<8x128xf32> -> vector<8x128xf32>
    %17 = vector.extract_strided_slice %16 {offsets = [0, 0], sizes = [8, 64], strides = [1, 1]} : vector<8x128xf32> to vector<8x64xf32>
    %18 = vector.extract_strided_slice %16 {offsets = [0, 64], sizes = [8, 64], strides = [1, 1]} : vector<8x128xf32> to vector<8x64xf32>
    %19 = vector.extract_strided_slice %17 {offsets = [0, 0], sizes = [8, 16], strides = [1, 1]} : vector<8x64xf32> to vector<8x16xf32>
    %20 = arith.truncf %19 : vector<8x16xf32> to vector<8x16xbf16>
    %21 = tpu.iota {dimensions = array<i32: 0>} : vector<8x8xi32>
    %22 = tpu.iota {dimensions = array<i32: 1>} : vector<8x8xi32>
    %23 = arith.cmpi sle, %22, %21 : vector<8x8xi32>
    %24 = vector.extract_strided_slice %18 {offsets = [0, 0], sizes = [8, 16], strides = [1, 1]} : vector<8x64xf32> to vector<8x16xf32>
    %25 = arith.truncf %24 : vector<8x16xf32> to vector<8x16xbf16>
    %cst_8 = arith.constant dense<0.000000e+00> : vector<8x8xf32>
    %26 = tpu.matmul %25, %20, %cst_8 {dimension_numbers = #tpu.dot_dimension_numbers<[1], [1], [0], [0], [0, 0, 1, 0], [], []>} : vector<8x16xbf16>, vector<8x16xbf16>, vector<8x8xf32> -> vector<8x8xf32>
    %cst_9 = arith.constant 0.353553385 : f32
    %27 = vector.broadcast %cst_9 : f32 to vector<8x8xf32>
    %28 = arith.mulf %26, %27 : vector<8x8xf32>
    %cst_10 = arith.constant -1.000000e+20 : f32
    %29 = vector.broadcast %cst_10 : f32 to vector<8x8xf32>
    %30 = arith.select %23, %28, %29 : vector<8x8xi1>, vector<8x8xf32>
    %cst_11 = arith.constant dense<0xFF800000> : vector<8xf32>
    %31 = vector.multi_reduction <maximumf>, %30, %cst_11 [1] : vector<8x8xf32> to vector<8xf32>
    %32 = vector.shape_cast %31 : vector<8xf32> to vector<8x1xf32>
    %33 = vector.broadcast %32 : vector<8x1xf32> to vector<8x8xf32>
    %34 = arith.subf %30, %33 : vector<8x8xf32>
    %35 = math.exp %34 : vector<8x8xf32>
    %cst_12 = arith.constant dense<0.000000e+00> : vector<8xf32>
    %36 = vector.multi_reduction <add>, %35, %cst_12 [1] : vector<8x8xf32> to vector<8xf32>
    %37 = vector.shape_cast %36 : vector<8xf32> to vector<8x1xf32>
    %38 = tpu.reciprocal %37 {approx = true} : vector<8x1xf32> -> vector<8x1xf32>
    %39 = vector.broadcast %38 : vector<8x1xf32> to vector<8x8xf32>
    %40 = arith.mulf %35, %39 : vector<8x8xf32>
    %41 = arith.truncf %40 : vector<8x8xf32> to vector<8x8xbf16>
    %cst_13 = arith.constant dense<0.000000e+00> : vector<8x16xf32>
    %42 = tpu.matmul %41, %20, %cst_13 {dimension_numbers = #tpu.dot_dimension_numbers<[1], [0], [0], [1], [0, 0, 1, 1], [], []>} : vector<8x8xbf16>, vector<8x16xbf16>, vector<8x16xf32> -> vector<8x16xf32>
    %43 = vector.extract_strided_slice %18 {offsets = [0, 16], sizes = [8, 16], strides = [1, 1]} : vector<8x64xf32> to vector<8x16xf32>
    %44 = arith.truncf %43 : vector<8x16xf32> to vector<8x16xbf16>
    %cst_14 = arith.constant dense<0.000000e+00> : vector<8x8xf32>
    %45 = tpu.matmul %44, %20, %cst_14 {dimension_numbers = #tpu.dot_dimension_numbers<[1], [1], [0], [0], [0, 0, 1, 0], [], []>} : vector<8x16xbf16>, vector<8x16xbf16>, vector<8x8xf32> -> vector<8x8xf32>
    %cst_15 = arith.constant 0.353553385 : f32
    %46 = vector.broadcast %cst_15 : f32 to vector<8x8xf32>
    %47 = arith.mulf %45, %46 : vector<8x8xf32>
    %cst_16 = arith.constant -1.000000e+20 : f32
    %48 = vector.broadcast %cst_16 : f32 to vector<8x8xf32>
    %49 = arith.select %23, %47, %48 : vector<8x8xi1>, vector<8x8xf32>
    %cst_17 = arith.constant dense<0xFF800000> : vector<8xf32>
    %50 = vector.multi_reduction <maximumf>, %49, %cst_17 [1] : vector<8x8xf32> to vector<8xf32>
    %51 = vector.shape_cast %50 : vector<8xf32> to vector<8x1xf32>
    %52 = vector.broadcast %51 : vector<8x1xf32> to vector<8x8xf32>
    %53 = arith.subf %49, %52 : vector<8x8xf32>
    %54 = math.exp %53 : vector<8x8xf32>
    %cst_18 = arith.constant dense<0.000000e+00> : vector<8xf32>
    %55 = vector.multi_reduction <add>, %54, %cst_18 [1] : vector<8x8xf32> to vector<8xf32>
    %56 = vector.shape_cast %55 : vector<8xf32> to vector<8x1xf32>
    %57 = tpu.reciprocal %56 {approx = true} : vector<8x1xf32> -> vector<8x1xf32>
    %58 = vector.broadcast %57 : vector<8x1xf32> to vector<8x8xf32>
    %59 = arith.mulf %54, %58 : vector<8x8xf32>
    %60 = arith.truncf %59 : vector<8x8xf32> to vector<8x8xbf16>
    %cst_19 = arith.constant dense<0.000000e+00> : vector<8x16xf32>
    %61 = tpu.matmul %60, %20, %cst_19 {dimension_numbers = #tpu.dot_dimension_numbers<[1], [0], [0], [1], [0, 0, 1, 1], [], []>} : vector<8x8xbf16>, vector<8x16xbf16>, vector<8x16xf32> -> vector<8x16xf32>
    %62 = vector.extract_strided_slice %18 {offsets = [0, 32], sizes = [8, 16], strides = [1, 1]} : vector<8x64xf32> to vector<8x16xf32>
    %63 = arith.truncf %62 : vector<8x16xf32> to vector<8x16xbf16>
    %cst_20 = arith.constant dense<0.000000e+00> : vector<8x8xf32>
    %64 = tpu.matmul %63, %20, %cst_20 {dimension_numbers = #tpu.dot_dimension_numbers<[1], [1], [0], [0], [0, 0, 1, 0], [], []>} : vector<8x16xbf16>, vector<8x16xbf16>, vector<8x8xf32> -> vector<8x8xf32>
    %cst_21 = arith.constant 0.353553385 : f32
    %65 = vector.broadcast %cst_21 : f32 to vector<8x8xf32>
    %66 = arith.mulf %64, %65 : vector<8x8xf32>
    %cst_22 = arith.constant -1.000000e+20 : f32
    %67 = vector.broadcast %cst_22 : f32 to vector<8x8xf32>
    %68 = arith.select %23, %66, %67 : vector<8x8xi1>, vector<8x8xf32>
    %cst_23 = arith.constant dense<0xFF800000> : vector<8xf32>
    %69 = vector.multi_reduction <maximumf>, %68, %cst_23 [1] : vector<8x8xf32> to vector<8xf32>
    %70 = vector.shape_cast %69 : vector<8xf32> to vector<8x1xf32>
    %71 = vector.broadcast %70 : vector<8x1xf32> to vector<8x8xf32>
    %72 = arith.subf %68, %71 : vector<8x8xf32>
    %73 = math.exp %72 : vector<8x8xf32>
    %cst_24 = arith.constant dense<0.000000e+00> : vector<8xf32>
    %74 = vector.multi_reduction <add>, %73, %cst_24 [1] : vector<8x8xf32> to vector<8xf32>
    %75 = vector.shape_cast %74 : vector<8xf32> to vector<8x1xf32>
    %76 = tpu.reciprocal %75 {approx = true} : vector<8x1xf32> -> vector<8x1xf32>
    %77 = vector.broadcast %76 : vector<8x1xf32> to vector<8x8xf32>
    %78 = arith.mulf %73, %77 : vector<8x8xf32>
    %79 = arith.truncf %78 : vector<8x8xf32> to vector<8x8xbf16>
    %cst_25 = arith.constant dense<0.000000e+00> : vector<8x16xf32>
    %80 = tpu.matmul %79, %20, %cst_25 {dimension_numbers = #tpu.dot_dimension_numbers<[1], [0], [0], [1], [0, 0, 1, 1], [], []>} : vector<8x8xbf16>, vector<8x16xbf16>, vector<8x16xf32> -> vector<8x16xf32>
    %81 = vector.extract_strided_slice %18 {offsets = [0, 48], sizes = [8, 16], strides = [1, 1]} : vector<8x64xf32> to vector<8x16xf32>
    %82 = arith.truncf %81 : vector<8x16xf32> to vector<8x16xbf16>
    %cst_26 = arith.constant dense<0.000000e+00> : vector<8x8xf32>
    %83 = tpu.matmul %82, %20, %cst_26 {dimension_numbers = #tpu.dot_dimension_numbers<[1], [1], [0], [0], [0, 0, 1, 0], [], []>} : vector<8x16xbf16>, vector<8x16xbf16>, vector<8x8xf32> -> vector<8x8xf32>
    %cst_27 = arith.constant 0.353553385 : f32
    %84 = vector.broadcast %cst_27 : f32 to vector<8x8xf32>
    %85 = arith.mulf %83, %84 : vector<8x8xf32>
    %cst_28 = arith.constant -1.000000e+20 : f32
    %86 = vector.broadcast %cst_28 : f32 to vector<8x8xf32>
    %87 = arith.select %23, %85, %86 : vector<8x8xi1>, vector<8x8xf32>
    %cst_29 = arith.constant dense<0xFF800000> : vector<8xf32>
    %88 = vector.multi_reduction <maximumf>, %87, %cst_29 [1] : vector<8x8xf32> to vector<8xf32>
    %89 = vector.shape_cast %88 : vector<8xf32> to vector<8x1xf32>
    %90 = vector.broadcast %89 : vector<8x1xf32> to vector<8x8xf32>
    %91 = arith.subf %87, %90 : vector<8x8xf32>
    %92 = math.exp %91 : vector<8x8xf32>
    %cst_30 = arith.constant dense<0.000000e+00> : vector<8xf32>
    %93 = vector.multi_reduction <add>, %92, %cst_30 [1] : vector<8x8xf32> to vector<8xf32>
    %94 = vector.shape_cast %93 : vector<8xf32> to vector<8x1xf32>
    %95 = tpu.reciprocal %94 {approx = true} : vector<8x1xf32> -> vector<8x1xf32>
    %96 = vector.broadcast %95 : vector<8x1xf32> to vector<8x8xf32>
    %97 = arith.mulf %92, %96 : vector<8x8xf32>
    %98 = arith.truncf %97 : vector<8x8xf32> to vector<8x8xbf16>
    %cst_31 = arith.constant dense<0.000000e+00> : vector<8x16xf32>
    %99 = tpu.matmul %98, %20, %cst_31 {dimension_numbers = #tpu.dot_dimension_numbers<[1], [0], [0], [1], [0, 0, 1, 1], [], []>} : vector<8x8xbf16>, vector<8x16xbf16>, vector<8x16xf32> -> vector<8x16xf32>
    %100 = tpu.concatenate %42, %61, %80, %99 in 1 : vector<8x16xf32>, vector<8x16xf32>, vector<8x16xf32>, vector<8x16xf32> -> vector<8x64xf32>
    %101 = arith.truncf %100 : vector<8x64xf32> to vector<8x64xbf16>
    %c0_32 = arith.constant 0 : index
    %c0_33 = arith.constant 0 : index
    %102 = vector.load %arg5[%c0_32, %c0_33] : memref<64x32xbf16, #tpu.memory_space<vmem>>, vector<64x32xbf16>
    %cst_34 = arith.constant dense<0.000000e+00> : vector<8x32xf32>
    %103 = tpu.matmul %101, %102, %cst_34 {dimension_numbers = #tpu.dot_dimension_numbers<[1], [0], [0], [1], [0, 0, 1, 1], [], []>} : vector<8x64xbf16>, vector<64x32xbf16>, vector<8x32xf32> -> vector<8x32xf32>
    %104 = arith.addf %0, %103 : vector<8x32xf32>
    %c0_35 = arith.constant 0 : index
    %c0_36 = arith.constant 0 : index
    %105 = vector.load %arg3[%c0_35, %c0_36] : memref<1x32xf32, #tpu.memory_space<vmem>>, vector<1x32xf32>
    %106 = arith.mulf %104, %104 : vector<8x32xf32>
    %cst_37 = arith.constant dense<0.000000e+00> : vector<8xf32>
    %107 = vector.multi_reduction <add>, %106, %cst_37 [1] : vector<8x32xf32> to vector<8xf32>
    %108 = vector.shape_cast %107 : vector<8xf32> to vector<8x1xf32>
    %cst_38 = arith.constant 3.200000e+01 : f32
    %109 = vector.broadcast %cst_38 : f32 to vector<8x1xf32>
    %110 = arith.divf %108, %109 : vector<8x1xf32>
    %cst_39 = arith.constant 1.1920929E-7 : f32
    %111 = vector.broadcast %cst_39 : f32 to vector<8x1xf32>
    %112 = arith.addf %110, %111 : vector<8x1xf32>
    %113 = math.rsqrt %112 : vector<8x1xf32>
    %114 = vector.broadcast %113 : vector<8x1xf32> to vector<8x32xf32>
    %115 = arith.mulf %104, %114 : vector<8x32xf32>
    %116 = vector.broadcast %105 : vector<1x32xf32> to vector<8x32xf32>
    %117 = arith.mulf %115, %116 : vector<8x32xf32>
    %118 = arith.truncf %117 : vector<8x32xf32> to vector<8x32xbf16>
    %c0_40 = arith.constant 0 : index
    %c0_41 = arith.constant 0 : index
    %119 = vector.load %arg6[%c0_40, %c0_41] : memref<32x772xbf16, #tpu.memory_space<vmem>>, vector<32x772xbf16>
    %cst_42 = arith.constant dense<0.000000e+00> : vector<8x772xf32>
    %120 = tpu.matmul %118, %119, %cst_42 {dimension_numbers = #tpu.dot_dimension_numbers<[1], [0], [0], [1], [0, 0, 1, 1], [], []>} : vector<8x32xbf16>, vector<32x772xbf16>, vector<8x772xf32> -> vector<8x772xf32>
    %121 = vector.extract_strided_slice %120 {offsets = [0, 0], sizes = [8, 320], strides = [1, 1]} : vector<8x772xf32> to vector<8x320xf32>
    %122 = vector.extract_strided_slice %120 {offsets = [0, 384], sizes = [8, 320], strides = [1, 1]} : vector<8x772xf32> to vector<8x320xf32>
    %123 = vector.extract_strided_slice %120 {offsets = [0, 768], sizes = [8, 4], strides = [1, 1]} : vector<8x772xf32> to vector<8x4xf32>
    %cst_43 = arith.constant dense<0xFF800000> : vector<8xf32>
    %124 = vector.multi_reduction <maximumf>, %123, %cst_43 [1] : vector<8x4xf32> to vector<8xf32>
    %125 = vector.shape_cast %124 : vector<8xf32> to vector<8x1xf32>
    %126 = vector.broadcast %125 : vector<8x1xf32> to vector<8x4xf32>
    %127 = arith.cmpf oge, %123, %126 : vector<8x4xf32>
    %cst_44 = arith.constant -1.000000e+20 : f32
    %128 = vector.broadcast %cst_44 : f32 to vector<8x4xf32>
    %129 = arith.select %127, %128, %123 : vector<8x4xi1>, vector<8x4xf32>
    %cst_45 = arith.constant dense<0xFF800000> : vector<8xf32>
    %130 = vector.multi_reduction <maximumf>, %129, %cst_45 [1] : vector<8x4xf32> to vector<8xf32>
    %131 = vector.shape_cast %130 : vector<8xf32> to vector<8x1xf32>
    %132 = vector.broadcast %131 : vector<8x1xf32> to vector<8x4xf32>
    %133 = arith.cmpf oge, %123, %132 : vector<8x4xf32>
    %cst_46 = arith.constant -1.000000e+20 : f32
    %134 = vector.broadcast %cst_46 : f32 to vector<8x4xf32>
    %135 = arith.select %133, %123, %134 : vector<8x4xi1>, vector<8x4xf32>
    %136 = vector.broadcast %125 : vector<8x1xf32> to vector<8x4xf32>
    %137 = arith.subf %135, %136 : vector<8x4xf32>
    %138 = math.exp %137 : vector<8x4xf32>
    %cst_47 = arith.constant dense<0.000000e+00> : vector<8xf32>
    %139 = vector.multi_reduction <add>, %138, %cst_47 [1] : vector<8x4xf32> to vector<8xf32>
    %140 = vector.shape_cast %139 : vector<8xf32> to vector<8x1xf32>
    %141 = tpu.reciprocal %140 {approx = true} : vector<8x1xf32> -> vector<8x1xf32>
    %142 = vector.broadcast %141 : vector<8x1xf32> to vector<8x4xf32>
    %143 = arith.mulf %138, %142 : vector<8x4xf32>
    %cst_48 = arith.constant 0.000000e+00 : f32
    %144 = vector.broadcast %cst_48 : f32 to vector<8x320xf32>
    %145 = arith.subf %144, %121 : vector<8x320xf32>
    %146 = math.exp %145 : vector<8x320xf32>
    %cst_49 = arith.constant 1.000000e+00 : f32
    %147 = vector.broadcast %cst_49 : f32 to vector<8x320xf32>
    %148 = arith.addf %147, %146 : vector<8x320xf32>
    %149 = tpu.reciprocal %148 {approx = true} : vector<8x320xf32> -> vector<8x320xf32>
    %150 = arith.mulf %121, %149 : vector<8x320xf32>
    %151 = arith.mulf %150, %122 : vector<8x320xf32>
    %152 = vector.extract_strided_slice %143 {offsets = [0, 0], sizes = [8, 1], strides = [1, 1]} : vector<8x4xf32> to vector<8x1xf32>
    %153 = vector.shape_cast %152 : vector<8x1xf32> to vector<8x1xf32>
    %154 = vector.broadcast %153 : vector<8x1xf32> to vector<8x64xf32>
    %155 = vector.extract_strided_slice %143 {offsets = [0, 1], sizes = [8, 1], strides = [1, 1]} : vector<8x4xf32> to vector<8x1xf32>
    %156 = vector.shape_cast %155 : vector<8x1xf32> to vector<8x1xf32>
    %157 = vector.broadcast %156 : vector<8x1xf32> to vector<8x64xf32>
    %158 = vector.extract_strided_slice %143 {offsets = [0, 2], sizes = [8, 1], strides = [1, 1]} : vector<8x4xf32> to vector<8x1xf32>
    %159 = vector.shape_cast %158 : vector<8x1xf32> to vector<8x1xf32>
    %160 = vector.broadcast %159 : vector<8x1xf32> to vector<8x64xf32>
    %161 = vector.extract_strided_slice %143 {offsets = [0, 3], sizes = [8, 1], strides = [1, 1]} : vector<8x4xf32> to vector<8x1xf32>
    %162 = vector.shape_cast %161 : vector<8x1xf32> to vector<8x1xf32>
    %163 = vector.broadcast %162 : vector<8x1xf32> to vector<8x64xf32>
    %cst_50 = arith.constant 1.000000e+00 : f32
    %164 = vector.broadcast %cst_50 : f32 to vector<8x64xf32>
    %165 = tpu.concatenate %154, %157, %160, %163, %164 in 1 : vector<8x64xf32>, vector<8x64xf32>, vector<8x64xf32>, vector<8x64xf32>, vector<8x64xf32> -> vector<8x320xf32>
    %166 = arith.mulf %151, %165 : vector<8x320xf32>
    %167 = arith.truncf %166 : vector<8x320xf32> to vector<8x320xbf16>
    %c0_51 = arith.constant 0 : index
    %c0_52 = arith.constant 0 : index
    %168 = vector.load %arg7[%c0_51, %c0_52] : memref<320x32xbf16, #tpu.memory_space<vmem>>, vector<320x32xbf16>
    %cst_53 = arith.constant dense<0.000000e+00> : vector<8x32xf32>
    %169 = tpu.matmul %167, %168, %cst_53 {dimension_numbers = #tpu.dot_dimension_numbers<[1], [0], [0], [1], [0, 0, 1, 1], [], []>} : vector<8x320xbf16>, vector<320x32xbf16>, vector<8x32xf32> -> vector<8x32xf32>
    %170 = arith.addf %104, %169 : vector<8x32xf32>
    %171 = tpu.concatenate %170, %17 in 1 : vector<8x32xf32>, vector<8x64xf32> -> vector<8x96xf32>
    %c0_54 = arith.constant 0 : index
    %c0_55 = arith.constant 0 : index
    %172 = vector.load %arg8[%c0_54, %c0_55] : memref<8x96xf32, #tpu.memory_space<vmem>>, vector<8x96xf32>
    tpu.vector_store %arg8[%c0_54, %c0_55], %171 {strides = array<i32>} : memref<8x96xf32, #tpu.memory_space<vmem>>, vector<8x96xf32>,
    return
  }
  func.func @transform_0(%arg0: i32) -> (i32, i32) {
    %c0_i32 = arith.constant 0 : i32
    %c0_i32_0 = arith.constant 0 : i32
    return %arg0, %c0_i32 : i32, i32
  }
  func.func @transform_1(%arg0: i32) -> (i32, i32) {
    %c0_i32 = arith.constant 0 : i32
    %c0_i32_0 = arith.constant 0 : i32
    %c0_i32_1 = arith.constant 0 : i32
    return %c0_i32, %c0_i32_0 : i32, i32
  }
  func.func @transform_2(%arg0: i32) -> (i32, i32) {
    %c0_i32 = arith.constant 0 : i32
    %c0_i32_0 = arith.constant 0 : i32
    %c0_i32_1 = arith.constant 0 : i32
    return %c0_i32, %c0_i32_0 : i32, i32
  }
  func.func @transform_3(%arg0: i32) -> (i32, i32) {
    %c0_i32 = arith.constant 0 : i32
    %c0_i32_0 = arith.constant 0 : i32
    %c0_i32_1 = arith.constant 0 : i32
    return %c0_i32, %c0_i32_0 : i32, i32
  }
  func.func @transform_4(%arg0: i32) -> (i32, i32) {
    %c0_i32 = arith.constant 0 : i32
    %c0_i32_0 = arith.constant 0 : i32
    %c0_i32_1 = arith.constant 0 : i32
    return %c0_i32, %c0_i32_0 : i32, i32
  }
  func.func @transform_5(%arg0: i32) -> (i32, i32) {
    %c0_i32 = arith.constant 0 : i32
    %c0_i32_0 = arith.constant 0 : i32
    %c0_i32_1 = arith.constant 0 : i32
    return %c0_i32, %c0_i32_0 : i32, i32
  }
  func.func @transform_6(%arg0: i32) -> (i32, i32) {
    %c0_i32 = arith.constant 0 : i32
    %c0_i32_0 = arith.constant 0 : i32
    %c0_i32_1 = arith.constant 0 : i32
    return %c0_i32, %c0_i32_0 : i32, i32
  }
  func.func @transform_7(%arg0: i32) -> (i32, i32) {
    %c0_i32 = arith.constant 0 : i32
    %c0_i32_0 = arith.constant 0 : i32
    return %arg0, %c0_i32 : i32, i32
  }
}

</mosaic_0001>

<llo_original>
// kernel: decoder_layer.1
$region0: #{decoder_layer.1}
  #allocation0 [shape = 'u32[]', space=smem, size = 0x4, offset = 0x4, fixed_abs, tag = 'smem constant byte address 0x4 - core index']
  #allocation1 [shape = 'u32[72,128]{1,0:T(1,128)}', space=vmem, size = 0x9000, scoped, tag = 'internal scratch']
  %s0 = inlined_call_operand.vmem [shape: f32[16,32], index: 0, kind: input, shape index: {}]
  %s1 = inlined_call_operand.vmem [shape: f32[1,32], index: 1, kind: input, shape index: {}]
  %s2 = inlined_call_operand.vmem [shape: f32[1,32], index: 2, kind: input, shape index: {}]
  %s3 = inlined_call_operand.vmem [shape: bf16[32,128], index: 3, kind: input, shape index: {}]
  %s4 = inlined_call_operand.vmem [shape: bf16[64,32], index: 4, kind: input, shape index: {}]
  %s5 = inlined_call_operand.vmem [shape: bf16[32,772], index: 5, kind: input, shape index: {}]
  %s6 = inlined_call_operand.vmem [shape: bf16[320,32], index: 6, kind: input, shape index: {}]
  %s7 = inlined_call_operand.vmem [shape: f32[16,96], index: 7, kind: output, shape index: {}]
  %s8 = sld [smem:[#allocation0]]
  $region61: #{decoder_layer.1} parent=0
    _
  %s10 = ssub.s32 1, %s8
  %s11 = scalar_select 0, %s10, %s8
  loop: start=0, step=1, limit=4
  $region2: #{decoder_layer.1} parent=0 // loop_pre_header
    _
  $region3: #{decoder_layer.1} parent=0 // loop_header
    %s13 = sphi 0, %s17
    %p14 = scmp.ge.s32.totalorder %s13, 4
    %s23 = sphi 0, %s25
    %s26 = sphi 0, %s23
    %s27 = sphi 0, %s26
    %s43 = sphi 0, %s27
    %s47 = sphi 0, %s47
    %s49 = sphi 0, %s47
    %s50 = sphi 0, %s49
    %s64 = sphi 0, %s50
    %s68 = sphi 0, %s68
    %s70 = sphi 0, %s68
    %s71 = sphi 0, %s70
    %s85 = sphi 0, %s71
    %s89 = sphi 0, %s89
    %s91 = sphi 0, %s89
    %s92 = sphi 0, %s91
    %s106 = sphi 0, %s92
    %s110 = sphi 0, %s110
    %s112 = sphi 0, %s110
    %s113 = sphi 0, %s112
    %s127 = sphi 0, %s113
    %s131 = sphi 0, %s131
    %s133 = sphi 0, %s131
    %s134 = sphi 0, %s133
    %s148 = sphi 0, %s134
    %s152 = sphi 0, %s152
    %s154 = sphi 0, %s152
    %s155 = sphi 0, %s154
    %s169 = sphi 0, %s155
    %s175 = sphi 0, %s177
    %s178 = sphi 0, %s175
    %s179 = sphi 0, %s178
    %s195 = sphi 0, %s179
  $region4: #{decoder_layer.1} parent=0 // loop_header_branch
    %16 = sbr.rel (%p14) target = $region8
  $region5: #{decoder_layer.1} parent=0 // loop_body
    %s18 = ssub.s32 %s13, 1
    %s19 = ssub.s32 %s13, 2
    %s20 = sadd.s32 %s13, 1
    %s21 = ssub.s32 %s13, %s20
    %p22 = scmp.eq.s32.totalorder %s21, 0
    %s24 = sadd.s32 %s23, 1
    %s25 = scalar_select %p22, %s23, %s24
    %p28 = pneg %p22
    %p29 = scmp.eq.s32.totalorder %s13, 1
    %p30 = por %p28, %p29
    %p31 = scmp.ne.s32.totalorder %s23, %s26
    %p32 = scmp.eq.s32.totalorder %s13, 0
    %p33 = por %p31, %p32
    %p34 = scmp.ne.s32.totalorder %s23, %s26
    %p35 = scmp.eq.s32.totalorder %s18, 1
    %p36 = por %p34, %p35
    %p37 = scmp.ne.s32.totalorder %s26, %s27
    %p38 = scmp.eq.s32.totalorder %s18, 0
    %p39 = por %p37, %p38
    %p40 = scmp.ne.s32.totalorder %s26, %s27
    %p41 = scmp.eq.s32.totalorder %s19, 1
    %p42 = por %p40, %p41
    %p44 = scmp.ne.s32.totalorder %s27, %s43
    %p45 = scmp.eq.s32.totalorder %s19, 0
    %p46 = por %p44, %p45
    %s48 = sadd.s32 %s47, 1
    %p51 = scmp.eq.s32.totalorder %s13, 1
    %p52 = scmp.ne.s32.totalorder %s47, %s49
    %p53 = scmp.eq.s32.totalorder %s13, 0
    %p54 = por %p52, %p53
    %p55 = scmp.ne.s32.totalorder %s47, %s49
    %p56 = scmp.eq.s32.totalorder %s18, 1
    %p57 = por %p55, %p56
    %p58 = scmp.ne.s32.totalorder %s49, %s50
    %p59 = scmp.eq.s32.totalorder %s18, 0
    %p60 = por %p58, %p59
    %p61 = scmp.ne.s32.totalorder %s49, %s50
    %p62 = scmp.eq.s32.totalorder %s19, 1
    %p63 = por %p61, %p62
    %p65 = scmp.ne.s32.totalorder %s50, %s64
    %p66 = scmp.eq.s32.totalorder %s19, 0
    %p67 = por %p65, %p66
    %s69 = sadd.s32 %s68, 1
    %p72 = scmp.eq.s32.totalorder %s13, 1
    %p73 = scmp.ne.s32.totalorder %s68, %s70
    %p74 = scmp.eq.s32.totalorder %s13, 0
    %p75 = por %p73, %p74
    %p76 = scmp.ne.s32.totalorder %s68, %s70
    %p77 = scmp.eq.s32.totalorder %s18, 1
    %p78 = por %p76, %p77
    %p79 = scmp.ne.s32.totalorder %s70, %s71
    %p80 = scmp.eq.s32.totalorder %s18, 0
    %p81 = por %p79, %p80
    %p82 = scmp.ne.s32.totalorder %s70, %s71
    %p83 = scmp.eq.s32.totalorder %s19, 1
    %p84 = por %p82, %p83
    %p86 = scmp.ne.s32.totalorder %s71, %s85
    %p87 = scmp.eq.s32.totalorder %s19, 0
    %p88 = por %p86, %p87
    %s90 = sadd.s32 %s89, 1
    %p93 = scmp.eq.s32.totalorder %s13, 1
    %p94 = scmp.ne.s32.totalorder %s89, %s91
    %p95 = scmp.eq.s32.totalorder %s13, 0
    %p96 = por %p94, %p95
    %p97 = scmp.ne.s32.totalorder %s89, %s91
    %p98 = scmp.eq.s32.totalorder %s18, 1
    %p99 = por %p97, %p98
    %p100 = scmp.ne.s32.totalorder %s91, %s92
    %p101 = scmp.eq.s32.totalorder %s18, 0
    %p102 = por %p100, %p101
    %p103 = scmp.ne.s32.totalorder %s91, %s92
    %p104 = scmp.eq.s32.totalorder %s19, 1
    %p105 = por %p103, %p104
    %p107 = scmp.ne.s32.totalorder %s92, %s106
    %p108 = scmp.eq.s32.totalorder %s19, 0
    %p109 = por %p107, %p108
    %s111 = sadd.s32 %s110, 1
    %p114 = scmp.eq.s32.totalorder %s13, 1
    %p115 = scmp.ne.s32.totalorder %s110, %s112
    %p116 = scmp.eq.s32.totalorder %s13, 0
    %p117 = por %p115, %p116
    %p118 = scmp.ne.s32.totalorder %s110, %s112
    %p119 = scmp.eq.s32.totalorder %s18, 1
    %p120 = por %p118, %p119
    %p121 = scmp.ne.s32.totalorder %s112, %s113
    %p122 = scmp.eq.s32.totalorder %s18, 0
    %p123 = por %p121, %p122
    %p124 = scmp.ne.s32.totalorder %s112, %s113
    %p125 = scmp.eq.s32.totalorder %s19, 1
    %p126 = por %p124, %p125
    %p128 = scmp.ne.s32.totalorder %s113, %s127
    %p129 = scmp.eq.s32.totalorder %s19, 0
    %p130 = por %p128, %p129
    %s132 = sadd.s32 %s131, 1
    %p135 = scmp.eq.s32.totalorder %s13, 1
    %p136 = scmp.ne.s32.totalorder %s131, %s133
    %p137 = scmp.eq.s32.totalorder %s13, 0
    %p138 = por %p136, %p137
    %p139 = scmp.ne.s32.totalorder %s131, %s133
    %p140 = scmp.eq.s32.totalorder %s18, 1
    %p141 = por %p139, %p140
    %p142 = scmp.ne.s32.totalorder %s133, %s134
    %p143 = scmp.eq.s32.totalorder %s18, 0
    %p144 = por %p142, %p143
    %p145 = scmp.ne.s32.totalorder %s133, %s134
    %p146 = scmp.eq.s32.totalorder %s19, 1
    %p147 = por %p145, %p146
    %p149 = scmp.ne.s32.totalorder %s134, %s148
    %p150 = scmp.eq.s32.totalorder %s19, 0
    %p151 = por %p149, %p150
    %s153 = sadd.s32 %s152, 1
    %p156 = scmp.eq.s32.totalorder %s13, 1
    %p157 = scmp.ne.s32.totalorder %s152, %s154
    %p158 = scmp.eq.s32.totalorder %s13, 0
    %p159 = por %p157, %p158
    %p160 = scmp.ne.s32.totalorder %s152, %s154
    %p161 = scmp.eq.s32.totalorder %s18, 1
    %p162 = por %p160, %p161
    %p163 = scmp.ne.s32.totalorder %s154, %s155
    %p164 = scmp.eq.s32.totalorder %s18, 0
    %p165 = por %p163, %p164
    %p166 = scmp.ne.s32.totalorder %s154, %s155
    %p167 = scmp.eq.s32.totalorder %s19, 1
    %p168 = por %p166, %p167
    %p170 = scmp.ne.s32.totalorder %s155, %s169
    %p171 = scmp.eq.s32.totalorder %s19, 0
    %p172 = por %p170, %p171
    %s173 = ssub.s32 %s13, %s20
    %p174 = scmp.eq.s32.totalorder %s173, 0
    %s176 = sadd.s32 %s175, 1
    %s177 = scalar_select %p174, %s175, %s176
    %p180 = pneg %p174
    %p181 = scmp.eq.s32.totalorder %s13, 1
    %p182 = por %p180, %p181
    %p183 = scmp.ne.s32.totalorder %s175, %s178
    %p184 = scmp.eq.s32.totalorder %s13, 0
    %p185 = por %p183, %p184
    %p186 = scmp.ne.s32.totalorder %s175, %s178
    %p187 = scmp.eq.s32.totalorder %s18, 1
    %p188 = por %p186, %p187
    %p189 = scmp.ne.s32.totalorder %s178, %s179
    %p190 = scmp.eq.s32.totalorder %s18, 0
    %p191 = por %p189, %p190
    %p192 = scmp.ne.s32.totalorder %s178, %s179
    %p193 = scmp.eq.s32.totalorder %s19, 1
    %p194 = por %p192, %p193
    %p196 = scmp.ne.s32.totalorder %s179, %s195
    %p197 = scmp.eq.s32.totalorder %s19, 0
    %p198 = por %p196, %p197
    %p199 = scmp.le.s32.totalorder 1, %s13
    %p200 = scmp.lt.s32.totalorder %s13, 3
    %p201 = pnand %p199, %p200
    %p202 = pneg %p201
    // Predicated region
    $region9: #{decoder_layer.1} parent=5 // pred_check
      _
    $region10: #{decoder_layer.1} parent=5 // pred_check_branch
      %204 = sbr.rel (%p201) target = $region12
    $region11: #{decoder_layer.1} parent=5 // pred_region
      %s205 = ssub.s32 %s13, 1
      // Predicated region
      $region13: #{decoder_layer.1} parent=11 // pred_check
        %p206 = pneg %p60
      $region14: #{decoder_layer.1} parent=11 // pred_check_branch
        %208 = sbr.rel (%p206) target = $region16
      $region15: #{decoder_layer.1} parent=11 // pred_region
        _
      $region16: #{decoder_layer.1} parent=11 // pred_fallthru
        _
      // Predicated region
      $region17: #{decoder_layer.1} parent=11 // pred_check
        %p209 = pneg %p81
      $region18: #{decoder_layer.1} parent=11 // pred_check_branch
        %211 = sbr.rel (%p209) target = $region20
      $region19: #{decoder_layer.1} parent=11 // pred_region
        _
      $region20: #{decoder_layer.1} parent=11 // pred_fallthru
        _
      // Predicated region
      $region21: #{decoder_layer.1} parent=11 // pred_check
        %p212 = pneg %p102
      $region22: #{decoder_layer.1} parent=11 // pred_check_branch
        %214 = sbr.rel (%p212) target = $region24
      $region23: #{decoder_layer.1} parent=11 // pred_region
        _
      $region24: #{decoder_layer.1} parent=11 // pred_fallthru
        _
      // Predicated region
      $region25: #{decoder_layer.1} parent=11 // pred_check
        %p215 = pneg %p123
      $region26: #{decoder_layer.1} parent=11 // pred_check_branch
        %217 = sbr.rel (%p215) target = $region28
      $region27: #{decoder_layer.1} parent=11 // pred_region
        _
      $region28: #{decoder_layer.1} parent=11 // pred_fallthru
        _
      // Predicated region
      $region29: #{decoder_layer.1} parent=11 // pred_check
        %p218 = pneg %p144
      $region30: #{decoder_layer.1} parent=11 // pred_check_branch
        %220 = sbr.rel (%p218) target = $region32
      $region31: #{decoder_layer.1} parent=11 // pred_region
        _
      $region32: #{decoder_layer.1} parent=11 // pred_fallthru
        _
      // Predicated region
      $region33: #{decoder_layer.1} parent=11 // pred_check
        %p221 = pneg %p165
      $region34: #{decoder_layer.1} parent=11 // pred_check_branch
        %223 = sbr.rel (%p221) target = $region36
      $region35: #{decoder_layer.1} parent=11 // pred_region
        _
      $region36: #{decoder_layer.1} parent=11 // pred_fallthru
        _
    $region12: #{decoder_layer.1} parent=5 // pred_fallthru
      _
    %p224 = scmp.lt.s32.totalorder %s13, 2
    // Predicated region
    $region37: #{decoder_layer.1} parent=5 // pred_check
      %p225 = pneg %p224
    $region38: #{decoder_layer.1} parent=5 // pred_check_branch
      %227 = sbr.rel (%p225) target = $region40
    $region39: #{decoder_layer.1} parent=5 // pred_region
      // Predicated region
      $region41: #{decoder_layer.1} parent=39 // pred_check
        %p228 = pneg %p33
      $region42: #{decoder_layer.1} parent=39 // pred_check_branch
        %230 = sbr.rel (%p228) target = $region44
      $region43: #{decoder_layer.1} parent=39 // pred_region
        %p231 = scmp.lt.s32.totalorder %s13, 1
        %s232 = scalar_select %p231, %s13, 1
        %s233 = smul.addr %s232, 8
        %s234 = scalar_lea.vmem %s0, %s233
      $region44: #{decoder_layer.1} parent=39 // pred_fallthru
        _
    $region40: #{decoder_layer.1} parent=5 // pred_fallthru
      _
    %p235 = scmp.le.s32.totalorder 1, %s13
    %p236 = scmp.lt.s32.totalorder %s13, 3
    %p237 = pnand %p235, %p236
    %p238 = pneg %p237
    // Predicated region
    $region45: #{decoder_layer.1} parent=5 // pred_check
      _
    $region46: #{decoder_layer.1} parent=5 // pred_check_branch
      %240 = sbr.rel (%p237) target = $region48
    $region47: #{decoder_layer.1} parent=5 // pred_region
      %s241 = ssub.s32 %s13, 1
      %p242 = scmp.lt.s32.totalorder %s18, 1
      %s243 = scalar_select %p242, %s18, 1
      %s244 = smul.addr %s243, 8
      %s245 = scalar_lea.vmem %s0, %s244
      %p246 = pneg %p39
      %p247 = pneg %p36
      %p248 = pneg %p60
      %p249 = pneg %p57
      %p250 = pneg %p81
      %p251 = pneg %p78
      %p252 = pneg %p102
      %p253 = pneg %p99
      %p254 = pneg %p123
      %p255 = pneg %p120
      %p256 = pneg %p144
      %p257 = pneg %p141
      %p258 = pneg %p165
      %p259 = pneg %p162
      %p260 = pneg %p191
      %p261 = pneg %p188
      %p262 = scmp.lt.s32.totalorder %s18, 1
      %s263 = scalar_select %p262, %s18, 1
      %s264 = smul.addr %s263, 8
      %s265 = scalar_lea.vmem %s7, %s264
      %p266 = scmp.lt.s32.totalorder %s18, 1
      %s267 = scalar_select %p266, %s18, 1
      %s268 = smul.addr %s267, 8
      %s269 = scalar_lea.vmem %s0, %s268
      %p270 = scmp.lt.s32.totalorder %s18, 1
      %s271 = scalar_select %p270, %s18, 1
      %s272 = smul.addr %s271, 8
      %s273 = scalar_lea.vmem %s7, %s272
      %v275 = vld [vmem:[%s269] sm:$0xff]
      %v276 = vld [vmem:[%s1] sm:$0x1]
      %v277 = vmul.f32 %v275, %v275
      %vm278 = vcmask 261120
      %v279 = vsel %vm278, %v277, 0.0
      %280 = vadd.xlane.f32.xlu0 %v279
      %v281 = vpop.xlane.xlu0 %280
      %v282 = vrcp.pop 32.0
      %v283 = vmul.f32 32.0, %v282
      %v284 = vsub.f32 1.0, %v283
      %v285 = vmul.f32 %v282, %v284
      %v286 = vadd.f32 %v282, %v285
      %vm287 = vweird.f32 %v282
      %v288 = vsel %vm287, %v282, %v286
      %v289 = vmul.f32 %v281, %v288
      %v290 = vadd.f32 %v289, 1.1920929e-07
      %v291 = vrsqrt.pop %v290
      %v292 = vmul.f32 %v291, %v290
      %v293 = vmul.f32 %v292, %v291
      %v294 = vmul.f32 0.5, %v293
      %v295 = vsub.f32 1.5, %v294
      %v296 = vmul.f32 %v291, %v295
      %vm297 = vweird.f32 %v290
      %vm298 = vweird.f32 %v291
      %vm299 = vmor %vm297, %vm298
      %v300 = vsel %vm299, %v291, %v296
      %v301 = vmul.f32 %v275, %v300
      %v303 = vperm.slane %v276, 0
      %v305 = vmul.f32 %v301, %v303
      %v306 = vpack.c.bf16 %v305, %v305
      %v307 = vld [vmem:[%s3] sm:$0xf]
      %v308 = vld [vmem:[%s3 + $0x4] sm:$0xf]
      %v309 = vld [vmem:[%s3 + $0x8] sm:$0xf]
      %v310 = vld [vmem:[%s3 + $0xc] sm:$0xf]
      %v315 = vunpack.c.l.b16 %v307
      %v316 = vunpack.c.l.b16 %v308
      %v317 = vunpack.c.l.b16 %v309
      %v318 = vunpack.c.l.b16 %v310
      %v319 = vpack.c.b16 %v316, %v315
      %v320 = vpack.c.b16 %v318, %v317
      %v324 = vsel %vm278, %v306, 0
      %326 = vmatpush.bf16.msra.mxu0 0
      %327 = vmatpush.bf16.msra.mxu0 0
      %328 = vmatpush.bf16.msra.mxu0 0
      %329 = vmatpush.bf16.msra.mxu0 0
      %330 = vmatpush.bf16.msra.mxu0 0
      %331 = vmatpush.bf16.msra.mxu0 0
      %332 = vmatpush.bf16.msra.mxu0 %v320
      %333 = vmatpush.bf16.msra.mxu0 %v319
      %334 = vmatmul.bf16.gmra.mxu0 %v324
      %v335 = vpop.f32.mrf.mxu0
      %v336 = vadd.f32 0.0, %v335
      %v337 = vpop.f32.mrf.mxu0
      %338 = vdwg.mxu0
      %v339 = vpack.c.bf16 %v336, %v336
      %v340 = vlaneseq
      %v341 = vshrl.u32 %v340, 7
      %v342 = vlaneseq
      %v343 = vand.u32 %v342, 127
      %vm344 = vcmp.le.s32.totalorder %v343, %v341
      %346 = vrot.lane.b32.xlu0 %v339, 64
      %v347 = vpop.permute.xlu0 %346
      %vm348 = vcmask 130048
      %v350 = vsel %vm348, %v347, 0
      %v353 = vsel %vm348, %v339, 0
      %355 = vmatpush.bf16.xpose.msra.mxu0 0
      %356 = vmatpush.bf16.xpose.msra.mxu0 0
      %357 = vmatpush.bf16.xpose.msra.mxu0 0
      %358 = vmatpush.bf16.xpose.msra.mxu0 0
      %359 = vmatpush.bf16.xpose.msra.mxu0 0
      %360 = vmatpush.bf16.xpose.msra.mxu0 0
      %361 = vmatpush.bf16.xpose.msra.mxu0 0
      %362 = vmatpush.bf16.xpose.msra.mxu0 %v353
      %363 = vmatmul.bf16.gmra.mxu0 %v350
      %v364 = vpop.f32.mrf.mxu0
      %v365 = vadd.f32 0.0, %v364
      %v366 = vpop.f32.mrf.mxu0
      %367 = vdwg.mxu0
      %v368 = vmul.f32 %v365, 0.35355338
      %v369 = vsel %vm344, %v368, -1e+20
      %vm370 = vcmask 64512
      %v371 = vsel %vm370, %v369, -inf
      %372 = vmax.xlane.f32.xlu0 %v371
      %v373 = vpop.xlane.xlu0 %372
      %v374 = vsub.f32 %v369, %v373
      %v375 = vmul.f32 %v374, 1.442695
      %v376 = vpow.pop %v375
      %v377 = vsel %vm370, %v376, 0.0
      %378 = vadd.xlane.f32.xlu0 %v377
      %v379 = vpop.xlane.xlu0 %378
      %v380 = vrcp.pop %v379
      %v381 = vmul.f32 %v376, %v380
      %v382 = vpack.c.bf16 %v381, %v381
      %v384 = vsel %vm370, %v382, 0
      %vm386 = vcmask 1043456
      %v387 = vsel %vm386, %v339, 0
      %389 = vmatpush.bf16.msra.mxu0 0
      %390 = vmatpush.bf16.msra.mxu0 0
      %391 = vmatpush.bf16.msra.mxu0 0
      %392 = vmatpush.bf16.msra.mxu0 0
      %393 = vmatpush.bf16.msra.mxu0 0
      %394 = vmatpush.bf16.msra.mxu0 0
      %395 = vmatpush.bf16.msra.mxu0 0
      %396 = vmatpush.bf16.msra.mxu0 %v387
      %397 = vmatmul.bf16.gmra.mxu0 %v384
      %v398 = vpop.f32.mrf.mxu0
      %v399 = vadd.f32 0.0, %v398
      %v400 = vpop.f32.mrf.mxu0
      %401 = vdwg.mxu0
      %402 = vrot.lane.b32.xlu0 %v339, 48
      %v403 = vpop.permute.xlu0 %402
      %v405 = vsel %vm348, %v403, 0
      %407 = vmatpush.bf16.xpose.msra.mxu0 0
      %408 = vmatpush.bf16.xpose.msra.mxu0 0
      %409 = vmatpush.bf16.xpose.msra.mxu0 0
      %410 = vmatpush.bf16.xpose.msra.mxu0 0
      %411 = vmatpush.bf16.xpose.msra.mxu0 0
      %412 = vmatpush.bf16.xpose.msra.mxu0 0
      %413 = vmatpush.bf16.xpose.msra.mxu0 0
      %414 = vmatpush.bf16.xpose.msra.mxu0 %v353
      %415 = vmatmul.bf16.gmra.mxu0 %v405
      %v416 = vpop.f32.mrf.mxu0
      %v417 = vadd.f32 0.0, %v416
      %v418 = vpop.f32.mrf.mxu0
      %419 = vdwg.mxu0
      %v420 = vmul.f32 %v417, 0.35355338
      %v421 = vsel %vm344, %v420, -1e+20
      %v422 = vsel %vm370, %v421, -inf
      %423 = vmax.xlane.f32.xlu0 %v422
      %v424 = vpop.xlane.xlu0 %423
      %v425 = vsub.f32 %v421, %v424
      %v426 = vmul.f32 %v425, 1.442695
      %v427 = vpow.pop %v426
      %v428 = vsel %vm370, %v427, 0.0
      %429 = vadd.xlane.f32.xlu0 %v428
      %v430 = vpop.xlane.xlu0 %429
      %v431 = vrcp.pop %v430
      %v432 = vmul.f32 %v427, %v431
      %v433 = vpack.c.bf16 %v432, %v432
      %v435 = vsel %vm370, %v433, 0
      %437 = vmatpush.bf16.msra.mxu0 0
      %438 = vmatpush.bf16.msra.mxu0 0
      %439 = vmatpush.bf16.msra.mxu0 0
      %440 = vmatpush.bf16.msra.mxu0 0
      %441 = vmatpush.bf16.msra.mxu0 0
      %442 = vmatpush.bf16.msra.mxu0 0
      %443 = vmatpush.bf16.msra.mxu0 0
      %444 = vmatpush.bf16.msra.mxu0 %v387
      %445 = vmatmul.bf16.gmra.mxu0 %v435
      %v446 = vpop.f32.mrf.mxu0
      %v447 = vadd.f32 0.0, %v446
      %v448 = vpop.f32.mrf.mxu0
      %449 = vdwg.mxu0
      %450 = vrot.lane.b32.xlu0 %v339, 32
      %v451 = vpop.permute.xlu0 %450
      %v453 = vsel %vm348, %v451, 0
      %455 = vmatpush.bf16.xpose.msra.mxu0 0
      %456 = vmatpush.bf16.xpose.msra.mxu0 0
      %457 = vmatpush.bf16.xpose.msra.mxu0 0
      %458 = vmatpush.bf16.xpose.msra.mxu0 0
      %459 = vmatpush.bf16.xpose.msra.mxu0 0
      %460 = vmatpush.bf16.xpose.msra.mxu0 0
      %461 = vmatpush.bf16.xpose.msra.mxu0 0
      %462 = vmatpush.bf16.xpose.msra.mxu0 %v353
      %463 = vmatmul.bf16.gmra.mxu0 %v453
      %v464 = vpop.f32.mrf.mxu0
      %v465 = vadd.f32 0.0, %v464
      %v466 = vpop.f32.mrf.mxu0
      %467 = vdwg.mxu0
      %v468 = vmul.f32 %v465, 0.35355338
      %v469 = vsel %vm344, %v468, -1e+20
      %v470 = vsel %vm370, %v469, -inf
      %471 = vmax.xlane.f32.xlu0 %v470
      %v472 = vpop.xlane.xlu0 %471
      %v473 = vsub.f32 %v469, %v472
      %v474 = vmul.f32 %v473, 1.442695
      %v475 = vpow.pop %v474
      %v476 = vsel %vm370, %v475, 0.0
      %477 = vadd.xlane.f32.xlu0 %v476
      %v478 = vpop.xlane.xlu0 %477
      %v479 = vrcp.pop %v478
      %v480 = vmul.f32 %v475, %v479
      %v481 = vpack.c.bf16 %v480, %v480
      %v483 = vsel %vm370, %v481, 0
      %485 = vmatpush.bf16.msra.mxu0 0
      %486 = vmatpush.bf16.msra.mxu0 0
      %487 = vmatpush.bf16.msra.mxu0 0
      %488 = vmatpush.bf16.msra.mxu0 0
      %489 = vmatpush.bf16.msra.mxu0 0
      %490 = vmatpush.bf16.msra.mxu0 0
      %491 = vmatpush.bf16.msra.mxu0 0
      %492 = vmatpush.bf16.msra.mxu0 %v387
      %493 = vmatmul.bf16.gmra.mxu0 %v483
      %v494 = vpop.f32.mrf.mxu0
      %v495 = vadd.f32 0.0, %v494
      %v496 = vpop.f32.mrf.mxu0
      %497 = vdwg.mxu0
      %498 = vrot.lane.b32.xlu0 %v339, 16
      %v499 = vpop.permute.xlu0 %498
      %v501 = vsel %vm348, %v499, 0
      %503 = vmatpush.bf16.xpose.msra.mxu0 0
      %504 = vmatpush.bf16.xpose.msra.mxu0 0
      %505 = vmatpush.bf16.xpose.msra.mxu0 0
      %506 = vmatpush.bf16.xpose.msra.mxu0 0
      %507 = vmatpush.bf16.xpose.msra.mxu0 0
      %508 = vmatpush.bf16.xpose.msra.mxu0 0
      %509 = vmatpush.bf16.xpose.msra.mxu0 0
      %510 = vmatpush.bf16.xpose.msra.mxu0 %v353
      %511 = vmatmul.bf16.gmra.mxu0 %v501
      %v512 = vpop.f32.mrf.mxu0
      %v513 = vadd.f32 0.0, %v512
      %v514 = vpop.f32.mrf.mxu0
      %515 = vdwg.mxu0
      %v516 = vmul.f32 %v513, 0.35355338
      %v517 = vsel %vm344, %v516, -1e+20
      %v518 = vsel %vm370, %v517, -inf
      %519 = vmax.xlane.f32.xlu0 %v518
      %v520 = vpop.xlane.xlu0 %519
      %v521 = vsub.f32 %v517, %v520
      %v522 = vmul.f32 %v521, 1.442695
      %v523 = vpow.pop %v522
      %v524 = vsel %vm370, %v523, 0.0
      %525 = vadd.xlane.f32.xlu0 %v524
      %v526 = vpop.xlane.xlu0 %525
      %v527 = vrcp.pop %v526
      %v528 = vmul.f32 %v523, %v527
      %v529 = vpack.c.bf16 %v528, %v528
      %v531 = vsel %vm370, %v529, 0
      %533 = vmatpush.bf16.msra.mxu0 0
      %534 = vmatpush.bf16.msra.mxu0 0
      %535 = vmatpush.bf16.msra.mxu0 0
      %536 = vmatpush.bf16.msra.mxu0 0
      %537 = vmatpush.bf16.msra.mxu0 0
      %538 = vmatpush.bf16.msra.mxu0 0
      %539 = vmatpush.bf16.msra.mxu0 0
      %540 = vmatpush.bf16.msra.mxu0 %v387
      %541 = vmatmul.bf16.gmra.mxu0 %v531
      %v542 = vpop.f32.mrf.mxu0
      %v543 = vadd.f32 0.0, %v542
      %v544 = vpop.f32.mrf.mxu0
      %545 = vdwg.mxu0
      %547 = vrot.lane.b32.xlu0 %v447, 16
      %v548 = vpop.permute.xlu0 %547
      %551 = vrot.lane.b32.xlu0 %v495, 32
      %v552 = vpop.permute.xlu0 %551
      %555 = vrot.lane.b32.xlu0 %v543, 48
      %v556 = vpop.permute.xlu0 %555
      %v558 = vsel %vm348, %v399, %v548
      %v559 = vsel %vm278, %v558, %v552
      %vm560 = vcmask 392192
      %v561 = vsel %vm560, %v559, %v556
      %v562 = vpack.c.bf16 %v561, %v561
      %v563 = vld [vmem:[%s4] sm:$0xf]
      %v564 = vld [vmem:[%s4 + $0x4] sm:$0xf]
      %v565 = vld [vmem:[%s4 + $0x8] sm:$0xf]
      %v566 = vld [vmem:[%s4 + $0xc] sm:$0xf]
      %v567 = vld [vmem:[%s4 + $0x10] sm:$0xf]
      %v568 = vld [vmem:[%s4 + $0x14] sm:$0xf]
      %v569 = vld [vmem:[%s4 + $0x18] sm:$0xf]
      %v570 = vld [vmem:[%s4 + $0x1c] sm:$0xf]
      %v579 = vunpack.c.l.b16 %v563
      %v580 = vunpack.c.l.b16 %v564
      %v581 = vunpack.c.l.b16 %v565
      %v582 = vunpack.c.l.b16 %v566
      %v583 = vunpack.c.l.b16 %v567
      %v584 = vunpack.c.l.b16 %v568
      %v585 = vunpack.c.l.b16 %v569
      %v586 = vunpack.c.l.b16 %v570
      %v587 = vpack.c.b16 %v580, %v579
      %v588 = vpack.c.b16 %v582, %v581
      %v589 = vpack.c.b16 %v584, %v583
      %v590 = vpack.c.b16 %v586, %v585
      %vm595 = vcmask 523264
      %v597 = vsel %vm595, %v562, 0
      %599 = vmatpush.bf16.msra.mxu0 0
      %600 = vmatpush.bf16.msra.mxu0 0
      %601 = vmatpush.bf16.msra.mxu0 0
      %602 = vmatpush.bf16.msra.mxu0 0
      %603 = vmatpush.bf16.msra.mxu0 %v590
      %604 = vmatpush.bf16.msra.mxu0 %v589
      %605 = vmatpush.bf16.msra.mxu0 %v588
      %606 = vmatpush.bf16.msra.mxu0 %v587
      %607 = vmatmul.bf16.gmra.mxu0 %v597
      %v608 = vpop.f32.mrf.mxu0
      %v609 = vadd.f32 0.0, %v608
      %v610 = vpop.f32.mrf.mxu0
      %611 = vdwg.mxu0
      %v612 = vadd.f32 %v275, %v609
      %v613 = vld [vmem:[%s2] sm:$0x1]
      %v614 = vmul.f32 %v612, %v612
      %v615 = vsel %vm278, %v614, 0.0
      %616 = vadd.xlane.f32.xlu0 %v615
      %v617 = vpop.xlane.xlu0 %616
      %v618 = vmul.f32 %v617, %v288
      %v619 = vadd.f32 %v618, 1.1920929e-07
      %v620 = vrsqrt.pop %v619
      %v621 = vmul.f32 %v620, %v619
      %v622 = vmul.f32 %v621, %v620
      %v623 = vmul.f32 0.5, %v622
      %v624 = vsub.f32 1.5, %v623
      %v625 = vmul.f32 %v620, %v624
      %vm626 = vweird.f32 %v619
      %vm627 = vweird.f32 %v620
      %vm628 = vmor %vm626, %vm627
      %v629 = vsel %vm628, %v620, %v625
      %v630 = vmul.f32 %v612, %v629
      %v632 = vperm.slane %v613, 0
      %v634 = vmul.f32 %v630, %v632
      %v635 = vpack.c.bf16 %v634, %v634
      %v636 = vld [vmem:[%s5] sm:$0xff]
      %v637 = vld [vmem:[%s5 + $0x8] sm:$0xff]
      %v638 = vld [vmem:[%s5 + $0x10] sm:$0xff]
      %v639 = vld [vmem:[%s5 + $0x18] sm:$0xf]
      %v640 = vld [vmem:[%s5 + $0x1c] sm:$0xff]
      %v641 = vld [vmem:[%s5 + $0x24] sm:$0xff]
      %v642 = vld [vmem:[%s5 + $0x2c] sm:$0xff]
      %v643 = vld [vmem:[%s5 + $0x34] sm:$0xf]
      %v644 = vld [vmem:[%s5 + $0x38] sm:$0xff]
      %v645 = vld [vmem:[%s5 + $0x40] sm:$0xff]
      %v646 = vld [vmem:[%s5 + $0x48] sm:$0xff]
      %v647 = vld [vmem:[%s5 + $0x50] sm:$0xf]
      %v648 = vld [vmem:[%s5 + $0x54] sm:$0xff]
      %v649 = vld [vmem:[%s5 + $0x5c] sm:$0xff]
      %v650 = vld [vmem:[%s5 + $0x64] sm:$0xff]
      %v651 = vld [vmem:[%s5 + $0x6c] sm:$0xf]
      %v668 = vunpack.c.l.b16 %v636
      %v669 = vunpack.c.h.b16 %v636
      %v670 = vunpack.c.l.b16 %v637
      %v671 = vunpack.c.h.b16 %v637
      %v672 = vunpack.c.l.b16 %v638
      %v673 = vunpack.c.h.b16 %v638
      %v674 = vunpack.c.l.b16 %v639
      %v675 = vunpack.c.l.b16 %v640
      %v676 = vunpack.c.h.b16 %v640
      %v677 = vunpack.c.l.b16 %v641
      %v678 = vunpack.c.h.b16 %v641
      %v679 = vunpack.c.l.b16 %v642
      %v680 = vunpack.c.h.b16 %v642
      %v681 = vunpack.c.l.b16 %v643
      %v682 = vunpack.c.l.b16 %v644
      %v683 = vunpack.c.h.b16 %v644
      %v684 = vunpack.c.l.b16 %v645
      %v685 = vunpack.c.h.b16 %v645
      %v686 = vunpack.c.l.b16 %v646
      %v687 = vunpack.c.h.b16 %v646
      %v688 = vunpack.c.l.b16 %v647
      %v689 = vunpack.c.l.b16 %v648
      %v690 = vunpack.c.h.b16 %v648
      %v691 = vunpack.c.l.b16 %v649
      %v692 = vunpack.c.h.b16 %v649
      %v693 = vunpack.c.l.b16 %v650
      %v694 = vunpack.c.h.b16 %v650
      %v695 = vunpack.c.l.b16 %v651
      %v696 = vpack.c.b16 %v675, %v668
      %v697 = vpack.c.b16 %v676, %v669
      %v698 = vpack.c.b16 %v677, %v670
      %v699 = vpack.c.b16 %v678, %v671
      %v700 = vpack.c.b16 %v679, %v672
      %v701 = vpack.c.b16 %v680, %v673
      %v702 = vpack.c.b16 %v681, %v674
      %v703 = vpack.c.b16 %v689, %v682
      %v704 = vpack.c.b16 %v690, %v683
      %v705 = vpack.c.b16 %v691, %v684
      %v706 = vpack.c.b16 %v692, %v685
      %v707 = vpack.c.b16 %v693, %v686
      %v708 = vpack.c.b16 %v694, %v687
      %v709 = vpack.c.b16 %v695, %v688
      %v725 = vsel %vm278, %v635, 0
      %727 = vmatpush.bf16.msra.mxu0 0
      %728 = vmatpush.bf16.msra.mxu0 0
      %729 = vmatpush.bf16.msra.mxu0 0
      %730 = vmatpush.bf16.msra.mxu0 0
      %731 = vmatpush.bf16.msra.mxu0 0
      %732 = vmatpush.bf16.msra.mxu0 0
      %733 = vmatpush.bf16.msra.mxu0 %v703
      %734 = vmatpush.bf16.msra.mxu0 %v696
      %735 = vmatmul.bf16.gmra.mxu0 %v725
      %v736 = vpop.f32.mrf.mxu0
      %v737 = vadd.f32 0.0, %v736
      %v738 = vpop.f32.mrf.mxu0
      %739 = vdwg.mxu0
      %740 = vmatpush.bf16.msra.mxu0 0
      %741 = vmatpush.bf16.msra.mxu0 0
      %742 = vmatpush.bf16.msra.mxu0 0
      %743 = vmatpush.bf16.msra.mxu0 0
      %744 = vmatpush.bf16.msra.mxu0 0
      %745 = vmatpush.bf16.msra.mxu0 0
      %746 = vmatpush.bf16.msra.mxu0 %v704
      %747 = vmatpush.bf16.msra.mxu0 %v697
      %748 = vmatmul.bf16.gmra.mxu0 %v725
      %v749 = vpop.f32.mrf.mxu0
      %v750 = vadd.f32 0.0, %v749
      %v751 = vpop.f32.mrf.mxu0
      %752 = vdwg.mxu0
      %753 = vmatpush.bf16.msra.mxu0 0
      %754 = vmatpush.bf16.msra.mxu0 0
      %755 = vmatpush.bf16.msra.mxu0 0
      %756 = vmatpush.bf16.msra.mxu0 0
      %757 = vmatpush.bf16.msra.mxu0 0
      %758 = vmatpush.bf16.msra.mxu0 0
      %759 = vmatpush.bf16.msra.mxu0 %v705
      %760 = vmatpush.bf16.msra.mxu0 %v698
      %761 = vmatmul.bf16.gmra.mxu0 %v725
      %v762 = vpop.f32.mrf.mxu0
      %v763 = vadd.f32 0.0, %v762
      %v764 = vpop.f32.mrf.mxu0
      %765 = vdwg.mxu0
      %766 = vmatpush.bf16.msra.mxu0 0
      %767 = vmatpush.bf16.msra.mxu0 0
      %768 = vmatpush.bf16.msra.mxu0 0
      %769 = vmatpush.bf16.msra.mxu0 0
      %770 = vmatpush.bf16.msra.mxu0 0
      %771 = vmatpush.bf16.msra.mxu0 0
      %772 = vmatpush.bf16.msra.mxu0 %v706
      %773 = vmatpush.bf16.msra.mxu0 %v699
      %774 = vmatmul.bf16.gmra.mxu0 %v725
      %v775 = vpop.f32.mrf.mxu0
      %v776 = vadd.f32 0.0, %v775
      %v777 = vpop.f32.mrf.mxu0
      %778 = vdwg.mxu0
      %779 = vmatpush.bf16.msra.mxu0 0
      %780 = vmatpush.bf16.msra.mxu0 0
      %781 = vmatpush.bf16.msra.mxu0 0
      %782 = vmatpush.bf16.msra.mxu0 0
      %783 = vmatpush.bf16.msra.mxu0 0
      %784 = vmatpush.bf16.msra.mxu0 0
      %785 = vmatpush.bf16.msra.mxu0 %v707
      %786 = vmatpush.bf16.msra.mxu0 %v700
      %787 = vmatmul.bf16.gmra.mxu0 %v725
      %v788 = vpop.f32.mrf.mxu0
      %v789 = vadd.f32 0.0, %v788
      %v790 = vpop.f32.mrf.mxu0
      %791 = vdwg.mxu0
      %792 = vmatpush.bf16.msra.mxu0 0
      %793 = vmatpush.bf16.msra.mxu0 0
      %794 = vmatpush.bf16.msra.mxu0 0
      %795 = vmatpush.bf16.msra.mxu0 0
      %796 = vmatpush.bf16.msra.mxu0 0
      %797 = vmatpush.bf16.msra.mxu0 0
      %798 = vmatpush.bf16.msra.mxu0 %v708
      %799 = vmatpush.bf16.msra.mxu0 %v701
      %800 = vmatmul.bf16.gmra.mxu0 %v725
      %v801 = vpop.f32.mrf.mxu0
      %v802 = vadd.f32 0.0, %v801
      %v803 = vpop.f32.mrf.mxu0
      %804 = vdwg.mxu0
      %805 = vmatpush.bf16.msra.mxu0 0
      %806 = vmatpush.bf16.msra.mxu0 0
      %807 = vmatpush.bf16.msra.mxu0 0
      %808 = vmatpush.bf16.msra.mxu0 0
      %809 = vmatpush.bf16.msra.mxu0 0
      %810 = vmatpush.bf16.msra.mxu0 0
      %811 = vmatpush.bf16.msra.mxu0 %v709
      %812 = vmatpush.bf16.msra.mxu0 %v702
      %813 = vmatmul.bf16.gmra.mxu0 %v725
      %v814 = vpop.f32.mrf.mxu0
      %v815 = vadd.f32 0.0, %v814
      %v816 = vpop.f32.mrf.mxu0
      %817 = vdwg.mxu0
      %vm818 = vcmask 31744
      %v819 = vsel %vm818, %v815, -inf
      %820 = vmax.xlane.f32.xlu0 %v819
      %v821 = vpop.xlane.xlu0 %820
      %vm822 = vcmp.ge.f32.partialorder %v815, %v821
      %v823 = vsel %vm822, -1e+20, %v815
      %v824 = vsel %vm818, %v823, -inf
      %825 = vmax.xlane.f32.xlu0 %v824
      %v826 = vpop.xlane.xlu0 %825
      %vm827 = vcmp.ge.f32.partialorder %v815, %v826
      %v828 = vsel %vm827, %v815, -1e+20
      %v829 = vsub.f32 %v828, %v821
      %v830 = vmul.f32 %v829, 1.442695
      %v831 = vpow.pop %v830
      %v832 = vsel %vm818, %v831, 0.0
      %833 = vadd.xlane.f32.xlu0 %v832
      %v834 = vpop.xlane.xlu0 %833
      %v835 = vrcp.pop %v834
      %v836 = vmul.f32 %v831, %v835
      %v837 = vsub.f32 0.0, %v737
      %v838 = vsub.f32 0.0, %v750
      %v839 = vsub.f32 0.0, %v763
      %v840 = vmul.f32 %v837, 1.442695
      %v841 = vpow.pop %v840
      %v842 = vmul.f32 %v838, 1.442695
      %v843 = vpow.pop %v842
      %v844 = vmul.f32 %v839, 1.442695
      %v845 = vpow.pop %v844
      %v846 = vadd.f32 %v841, 1.0
      %v847 = vadd.f32 %v843, 1.0
      %v848 = vadd.f32 %v845, 1.0
      %v849 = vrcp.pop %v846
      %v850 = vrcp.pop %v847
      %v851 = vrcp.pop %v848
      %v852 = vmul.f32 %v737, %v849
      %v853 = vmul.f32 %v750, %v850
      %v854 = vmul.f32 %v763, %v851
      %v855 = vmul.f32 %v852, %v776
      %v856 = vmul.f32 %v853, %v789
      %v857 = vmul.f32 %v854, %v802
      %859 = vset.pattern.permute.xlu0 0
      %860 = vperm.xlu0 %859, %v836
      %v861 = vpop.permute.xlu0 %860
      %863 = vset.pattern.permute.xlu0 1
      %864 = vperm.xlu0 %863, %v836
      %v865 = vpop.permute.xlu0 %864
      %867 = vset.pattern.permute.xlu0 2
      %868 = vperm.xlu0 %867, %v836
      %v869 = vpop.permute.xlu0 %868
      %871 = vset.pattern.permute.xlu0 3
      %872 = vperm.xlu0 %871, %v836
      %v873 = vpop.permute.xlu0 %872
      %v875 = vsel %vm595, %v861, %v865
      %v876 = vsel %vm595, %v869, %v873
      %v877 = vmul.f32 %v855, %v875
      %v878 = vmul.f32 %v856, %v876
      %v879 = vpack.c.bf16 %v877, %v877
      %v880 = vpack.c.bf16 %v878, %v878
      %v881 = vpack.c.bf16 %v857, %v857
      %v882 = vld [vmem:[%s6] sm:$0xf]
      %v883 = vld [vmem:[%s6 + $0x4] sm:$0xf]
      %v884 = vld [vmem:[%s6 + $0x8] sm:$0xf]
      %v885 = vld [vmem:[%s6 + $0xc] sm:$0xf]
      %v886 = vld [vmem:[%s6 + $0x10] sm:$0xf]
      %v887 = vld [vmem:[%s6 + $0x14] sm:$0xf]
      %v888 = vld [vmem:[%s6 + $0x18] sm:$0xf]
      %v889 = vld [vmem:[%s6 + $0x1c] sm:$0xf]
      %v890 = vld [vmem:[%s6 + $0x20] sm:$0xf]
      %v891 = vld [vmem:[%s6 + $0x24] sm:$0xf]
      %v892 = vld [vmem:[%s6 + $0x28] sm:$0xf]
      %v893 = vld [vmem:[%s6 + $0x2c] sm:$0xf]
      %v894 = vld [vmem:[%s6 + $0x30] sm:$0xf]
      %v895 = vld [vmem:[%s6 + $0x34] sm:$0xf]
      %v896 = vld [vmem:[%s6 + $0x38] sm:$0xf]
      %v897 = vld [vmem:[%s6 + $0x3c] sm:$0xf]
      %v898 = vld [vmem:[%s6 + $0x40] sm:$0xf]
      %v899 = vld [vmem:[%s6 + $0x44] sm:$0xf]
      %v900 = vld [vmem:[%s6 + $0x48] sm:$0xf]
      %v901 = vld [vmem:[%s6 + $0x4c] sm:$0xf]
      %v902 = vld [vmem:[%s6 + $0x50] sm:$0xf]
      %v903 = vld [vmem:[%s6 + $0x54] sm:$0xf]
      %v904 = vld [vmem:[%s6 + $0x58] sm:$0xf]
      %v905 = vld [vmem:[%s6 + $0x5c] sm:$0xf]
      %v906 = vld [vmem:[%s6 + $0x60] sm:$0xf]
      %v907 = vld [vmem:[%s6 + $0x64] sm:$0xf]
      %v908 = vld [vmem:[%s6 + $0x68] sm:$0xf]
      %v909 = vld [vmem:[%s6 + $0x6c] sm:$0xf]
      %v910 = vld [vmem:[%s6 + $0x70] sm:$0xf]
      %v911 = vld [vmem:[%s6 + $0x74] sm:$0xf]
      %v912 = vld [vmem:[%s6 + $0x78] sm:$0xf]
      %v913 = vld [vmem:[%s6 + $0x7c] sm:$0xf]
      %v914 = vld [vmem:[%s6 + $0x80] sm:$0xf]
      %v915 = vld [vmem:[%s6 + $0x84] sm:$0xf]
      %v916 = vld [vmem:[%s6 + $0x88] sm:$0xf]
      %v917 = vld [vmem:[%s6 + $0x8c] sm:$0xf]
      %v918 = vld [vmem:[%s6 + $0x90] sm:$0xf]
      %v919 = vld [vmem:[%s6 + $0x94] sm:$0xf]
      %v920 = vld [vmem:[%s6 + $0x98] sm:$0xf]
      %v921 = vld [vmem:[%s6 + $0x9c] sm:$0xf]
      %v962 = vunpack.c.l.b16 %v882
      %v963 = vunpack.c.l.b16 %v883
      %v964 = vunpack.c.l.b16 %v884
      %v965 = vunpack.c.l.b16 %v885
      %v966 = vunpack.c.l.b16 %v886
      %v967 = vunpack.c.l.b16 %v887
      %v968 = vunpack.c.l.b16 %v888
      %v969 = vunpack.c.l.b16 %v889
      %v970 = vunpack.c.l.b16 %v890
      %v971 = vunpack.c.l.b16 %v891
      %v972 = vunpack.c.l.b16 %v892
      %v973 = vunpack.c.l.b16 %v893
      %v974 = vunpack.c.l.b16 %v894
      %v975 = vunpack.c.l.b16 %v895
      %v976 = vunpack.c.l.b16 %v896
      %v977 = vunpack.c.l.b16 %v897
      %v978 = vunpack.c.l.b16 %v898
      %v979 = vunpack.c.l.b16 %v899
      %v980 = vunpack.c.l.b16 %v900
      %v981 = vunpack.c.l.b16 %v901
      %v982 = vunpack.c.l.b16 %v902
      %v983 = vunpack.c.l.b16 %v903
      %v984 = vunpack.c.l.b16 %v904
      %v985 = vunpack.c.l.b16 %v905
      %v986 = vunpack.c.l.b16 %v906
      %v987 = vunpack.c.l.b16 %v907
      %v988 = vunpack.c.l.b16 %v908
      %v989 = vunpack.c.l.b16 %v909
      %v990 = vunpack.c.l.b16 %v910
      %v991 = vunpack.c.l.b16 %v911
      %v992 = vunpack.c.l.b16 %v912
      %v993 = vunpack.c.l.b16 %v913
      %v994 = vunpack.c.l.b16 %v914
      %v995 = vunpack.c.l.b16 %v915
      %v996 = vunpack.c.l.b16 %v916
      %v997 = vunpack.c.l.b16 %v917
      %v998 = vunpack.c.l.b16 %v918
      %v999 = vunpack.c.l.b16 %v919
      %v1000 = vunpack.c.l.b16 %v920
      %v1001 = vunpack.c.l.b16 %v921
      %v1002 = vpack.c.b16 %v963, %v962
      %v1003 = vpack.c.b16 %v965, %v964
      %v1004 = vpack.c.b16 %v967, %v966
      %v1005 = vpack.c.b16 %v969, %v968
      %v1006 = vpack.c.b16 %v971, %v970
      %v1007 = vpack.c.b16 %v973, %v972
      %v1008 = vpack.c.b16 %v975, %v974
      %v1009 = vpack.c.b16 %v977, %v976
      %v1010 = vpack.c.b16 %v979, %v978
      %v1011 = vpack.c.b16 %v981, %v980
      %v1012 = vpack.c.b16 %v983, %v982
      %v1013 = vpack.c.b16 %v985, %v984
      %v1014 = vpack.c.b16 %v987, %v986
      %v1015 = vpack.c.b16 %v989, %v988
      %v1016 = vpack.c.b16 %v991, %v990
      %v1017 = vpack.c.b16 %v993, %v992
      %v1018 = vpack.c.b16 %v995, %v994
      %v1019 = vpack.c.b16 %v997, %v996
      %v1020 = vpack.c.b16 %v999, %v998
      %v1021 = vpack.c.b16 %v1001, %v1000
      %v1043 = vsel %vm595, %v881, 0
      %1045 = vmatpush.bf16.msra.mxu0 %v1009
      %1046 = vmatpush.bf16.msra.mxu0 %v1008
      %1047 = vmatpush.bf16.msra.mxu0 %v1007
      %1048 = vmatpush.bf16.msra.mxu0 %v1006
      %1049 = vmatpush.bf16.msra.mxu0 %v1005
      %1050 = vmatpush.bf16.msra.mxu0 %v1004
      %1051 = vmatpush.bf16.msra.mxu0 %v1003
      %1052 = vmatpush.bf16.msra.mxu0 %v1002
      %1053 = vmatmul.bf16.gmra.mxu0 %v879
      %v1054 = vpop.f32.mrf.mxu0
      %v1055 = vadd.f32 0.0, %v1054
      %v1056 = vpop.f32.mrf.mxu0
      %1057 = vdwg.mxu0
      %1058 = vmatpush.bf16.msra.mxu0 %v1017
      %1059 = vmatpush.bf16.msra.mxu0 %v1016
      %1060 = vmatpush.bf16.msra.mxu0 %v1015
      %1061 = vmatpush.bf16.msra.mxu0 %v1014
      %1062 = vmatpush.bf16.msra.mxu0 %v1013
      %1063 = vmatpush.bf16.msra.mxu0 %v1012
      %1064 = vmatpush.bf16.msra.mxu0 %v1011
      %1065 = vmatpush.bf16.msra.mxu0 %v1010
      %1066 = vmatmul.bf16.gmra.mxu0 %v880
      %v1067 = vpop.f32.mrf.mxu0
      %v1068 = vadd.f32 %v1055, %v1067
      %v1069 = vpop.f32.mrf.mxu0
      %1070 = vdwg.mxu0
      %1071 = vmatpush.bf16.msra.mxu0 0
      %1072 = vmatpush.bf16.msra.mxu0 0
      %1073 = vmatpush.bf16.msra.mxu0 0
      %1074 = vmatpush.bf16.msra.mxu0 0
      %1075 = vmatpush.bf16.msra.mxu0 %v1021
      %1076 = vmatpush.bf16.msra.mxu0 %v1020
      %1077 = vmatpush.bf16.msra.mxu0 %v1019
      %1078 = vmatpush.bf16.msra.mxu0 %v1018
      %1079 = vmatmul.bf16.gmra.mxu0 %v1043
      %v1080 = vpop.f32.mrf.mxu0
      %v1081 = vadd.f32 %v1068, %v1080
      %v1082 = vpop.f32.mrf.mxu0
      %1083 = vdwg.mxu0
      %v1084 = vadd.f32 %v612, %v1081
      %1086 = vrot.lane.b32.xlu0 %v336, 32
      %v1087 = vpop.permute.xlu0 %1086
      %v1089 = vsel %vm278, %v1084, %v1087
      %vm1090 = vcmask 785408
      %1091 = vst.msk [vmem:[%s273] sm:$0xff] %vm1090, %v1089
      %p1092 = scmp.lt.s32.totalorder %s18, 1
      %s1093 = scalar_select %p1092, %s18, 1
      %s1094 = smul.addr %s1093, 8
      %s1095 = scalar_lea.vmem %s7, %s1094
      // Predicated region
      $region49: #{decoder_layer.1} parent=47 // pred_check
        %p1096 = pneg %p188
      $region50: #{decoder_layer.1} parent=47 // pred_check_branch
        %1098 = sbr.rel (%p1096) target = $region52
      $region51: #{decoder_layer.1} parent=47 // pred_region
        _
      $region52: #{decoder_layer.1} parent=47 // pred_fallthru
        _
    $region48: #{decoder_layer.1} parent=5 // pred_fallthru
      _
    %p1099 = scmp.le.s32.totalorder 2, %s13
    // Predicated region
    $region53: #{decoder_layer.1} parent=5 // pred_check
      %p1100 = pneg %p1099
    $region54: #{decoder_layer.1} parent=5 // pred_check_branch
      %1102 = sbr.rel (%p1100) target = $region56
    $region55: #{decoder_layer.1} parent=5 // pred_region
      %s1103 = ssub.s32 %s13, 2
      // Predicated region
      $region57: #{decoder_layer.1} parent=55 // pred_check
        %p1104 = pneg %p194
      $region58: #{decoder_layer.1} parent=55 // pred_check_branch
        %1106 = sbr.rel (%p1104) target = $region60
      $region59: #{decoder_layer.1} parent=55 // pred_region
        %p1107 = scmp.lt.s32.totalorder %s19, 1
        %s1108 = scalar_select %p1107, %s19, 1
        %s1109 = smul.addr %s1108, 8
        %s1110 = scalar_lea.vmem %s7, %s1109
      $region60: #{decoder_layer.1} parent=55 // pred_fallthru
        _
    $region56: #{decoder_layer.1} parent=5 // pred_fallthru
      _
  $region6: #{decoder_layer.1} parent=0 // loop_footer
    %s17 = sadd.s32 1, %s13
  $region7: #{decoder_layer.1} parent=0 // loop_footer_branch
    %12 = sbr.rel target = $region3
  $region8: #{decoder_layer.1} parent=0 // loop_exit
    _

</llo_original>
